<compile_context>
chip_gen: v7x
topology: tpu7x:2x2x1
jax: 0.10.0
libtpu: 0.0.40
codegen_flags: <defaults>
</compile_context>

<pallas_src>
import jax
import jax.numpy as jnp
from jax.experimental import pallas as pl
from jax.experimental.pallas import tpu as pltpu


def _round_up(x, m):
    return ((x + m - 1) // m) * m


def _cdiv(a, b):
    return (a + b - 1) // b


def _qnet_kernel(x_ref, w1_ref, b1_ref, w2_ref, b2_ref, w3_ref, b3_ref, o_ref):
    # bf16 operands on the MXU, f32 accumulation, f32 bias/ReLU epilogue.
    x = x_ref[...]                                                     # bf16 (TILE_B, S)
    h1 = jnp.dot(x, w1_ref[...], preferred_element_type=jnp.float32) + b1_ref[...]
    h1 = jnp.maximum(h1, 0.0)                                          # f32 ReLU on VPU
    h2 = jnp.dot(h1.astype(jnp.bfloat16), w2_ref[...],
                 preferred_element_type=jnp.float32) + b2_ref[...]
    h2 = jnp.maximum(h2, 0.0)
    out = jnp.dot(h2.astype(jnp.bfloat16), w3_ref[...],
                  preferred_element_type=jnp.float32) + b3_ref[...]
    o_ref[...] = out.astype(o_ref.dtype)                               # bf16 store (8 lanes)


def simple_q_network(state, params, *, max_tile_b=4096, split_threshold=256):
    """state: (B, state_size) float32. params: dict of w1,b1,w2,b2,w3,b3 (f32).

    Weights are (in_features, out_features) -- transposed w.r.t. PyTorch -- so
    the kernel computes x @ W + b directly on the MXU.  Returns (B, action_size)
    float32 Q-values (bf16-precision: activations/weights/output travel as
    bf16 with f32 accumulation).
    """
    w1, b1 = params["w1"], params["b1"]
    w2, b2 = params["w2"], params["b2"]
    w3, b3 = params["w3"], params["b3"]

    B, state_size = state.shape
    fc1 = w1.shape[1]
    fc2 = w2.shape[1]
    action_size = w3.shape[1]

    # Pad the last layer's output dim only to a multiple of 8 (not 128): the
    # output block's last dim equals the full array dim, so masked stores are
    # legal and the writeback stream stays tiny.
    n_pad = _round_up(action_size, 8)
    w3p = jnp.zeros((fc2, n_pad), w3.dtype).at[:, :action_size].set(w3)
    b3p = jnp.zeros((1, n_pad), b3.dtype).at[:, :action_size].set(b3)

    # Balanced batch tiling with minimal padding; force >=2 (even) tiles for
    # moderate/large B so v7x's two TensorCores both get work.
    num_tiles = max(1, _cdiv(B, max_tile_b))
    if B >= split_threshold:
        num_tiles = max(2, num_tiles)
    if num_tiles > 1 and num_tiles % 2 == 1:
        num_tiles += 1
    tile_b = _round_up(_cdiv(B, num_tiles), 8)
    Bp = tile_b * num_tiles

    xp = state
    if Bp != B:
        xp = jnp.zeros((Bp, state_size), state.dtype).at[:B].set(state)

    # bf16 storage for activations & weights (halves HBM->VMEM bytes);
    # biases stay f32 for the f32 accumulator epilogue.
    xb = xp.astype(jnp.bfloat16)
    w1b = w1.astype(jnp.bfloat16)
    w2b = w2.astype(jnp.bfloat16)
    w3b = w3p.astype(jnp.bfloat16)
    b1f = b1.astype(jnp.float32)
    b2f = b2.astype(jnp.float32)
    b3f = b3p.astype(jnp.float32)

    grid = (num_tiles,)

    flops = 2 * Bp * (state_size * fc1 + fc1 * fc2 + fc2 * n_pad)
    bytes_accessed = (
        xb.size * 2 + w1b.size * 2 + w2b.size * 2 + w3b.size * 2   # bf16 inputs
        + b1f.size * 4 + b2f.size * 4 + b3f.size * 4               # f32 biases
        + Bp * n_pad * 2                                           # bf16 output
    )

    out_padded = pl.pallas_call(
        _qnet_kernel,
        out_shape=jax.ShapeDtypeStruct((Bp, n_pad), jnp.bfloat16),
        grid=grid,
        in_specs=[
            pl.BlockSpec((tile_b, state_size), lambda i: (i, 0)),  # x: tiled over batch
            pl.BlockSpec((state_size, fc1), lambda i: (0, 0)),     # weights/biases
            pl.BlockSpec((1, fc1), lambda i: (0, 0)),              #   resident across
            pl.BlockSpec((fc1, fc2), lambda i: (0, 0)),            #   all batch tiles
            pl.BlockSpec((1, fc2), lambda i: (0, 0)),
            pl.BlockSpec((fc2, n_pad), lambda i: (0, 0)),
            pl.BlockSpec((1, n_pad), lambda i: (0, 0)),
        ],
        out_specs=pl.BlockSpec((tile_b, n_pad), lambda i: (i, 0)),
        compiler_params=pltpu.CompilerParams(
            dimension_semantics=("parallel",),       # v7x: shard batch tiles over 2 TCs
            vmem_limit_bytes=32 * 1024 * 1024,       # explicit; covers tile_b=4096 w/ headroom
        ),
        cost_estimate=pl.CostEstimate(
            flops=flops, transcendentals=0, bytes_accessed=bytes_accessed),
    )(xb, w1b, b1f, w2b, b2f, w3b, b3f)

    # Slice away batch/lane padding and upcast outside the kernel.
    return out_padded[:B, :action_size].astype(jnp.float32)


def init_params(key, state_size, action_size, fc1_units=64, fc2_units=64):
    """Deterministic init mimicking PyTorch Linear default:
    U(-1/sqrt(fan_in), 1/sqrt(fan_in)) for both weights and biases."""
    def linear(k, fan_in, fan_out):
        kw, kb = jax.random.split(k)
        bound = 1.0 / jnp.sqrt(float(fan_in))
        w = jax.random.uniform(kw, (fan_in, fan_out), jnp.float32, -bound, bound)
        b = jax.random.uniform(kb, (1, fan_out), jnp.float32, -bound, bound)
        return w, b

    k1, k2, k3 = jax.random.split(key, 3)
    w1, b1 = linear(k1, state_size, fc1_units)
    w2, b2 = linear(k2, fc1_units, fc2_units)
    w3, b3 = linear(k3, fc2_units, action_size)
    return {"w1": w1, "b1": b1, "w2": w2, "b2": b2, "w3": w3, "b3": b3}


if __name__ == "__main__":
    key = jax.random.PRNGKey(0)
    k_params, k_state = jax.random.split(key)

    batch = 8
    state_size = 8
    action_size = 4

    params = init_params(k_params, state_size, action_size, fc1_units=64, fc2_units=64)
    state = jax.random.normal(k_state, (batch, state_size), dtype=jnp.float32)

    q_values = simple_q_network(state, params)
    jax.block_until_ready(q_values)
    assert q_values.shape == (batch, action_size)
    assert q_values.dtype == jnp.float32

    # Reference in plain JAX, mirroring the kernel's bf16 storage / f32
    # accumulation / bf16 output.
    def bf(x):
        return x.astype(jnp.bfloat16).astype(jnp.float32)

    h1 = jnp.maximum(bf(state) @ bf(params["w1"]) + params["b1"], 0.0)
    h2 = jnp.maximum(bf(h1) @ bf(params["w2"]) + params["b2"], 0.0)
    ref = bf(h2 @ bf(params["w3"]) + params["b3"])  # kernel's final store is bf16

    assert jnp.allclose(q_values, ref, atol=1e-2, rtol=1e-2), (
        jnp.max(jnp.abs(q_values - ref)))

    print("KERNEL_OK")
</pallas_src>

<mosaic_0001>
module attributes {stable_mosaic.version = 11 : i64} {
  func.func @_qnet_kernel(%arg0: i32, %arg1: memref<8x8xbf16, #tpu.memory_space<vmem>>, %arg2: memref<8x64xbf16, #tpu.memory_space<vmem>>, %arg3: memref<1x64xf32, #tpu.memory_space<vmem>>, %arg4: memref<64x64xbf16, #tpu.memory_space<vmem>>, %arg5: memref<1x64xf32, #tpu.memory_space<vmem>>, %arg6: memref<64x8xbf16, #tpu.memory_space<vmem>>, %arg7: memref<1x8xf32, #tpu.memory_space<vmem>>, %arg8: memref<8x8xbf16, #tpu.memory_space<vmem>>) attributes {dimension_semantics = [#tpu.dimension_semantics<parallel>], iteration_bounds = array<i64: 1>, scalar_prefetch = 0 : i64, scratch_operands = 0 : i64, tpu.core_type = #tpu.core_type<tc>, window_params = [{transform_indices = @transform_0, window_bounds = array<i64: 8, 8>}, {pipeline_mode = #tpu.pipeline_mode<synchronous>, transform_indices = @transform_1, window_bounds = array<i64: 8, 64>}, {pipeline_mode = #tpu.pipeline_mode<synchronous>, transform_indices = @transform_2, window_bounds = array<i64: 1, 64>}, {pipeline_mode = #tpu.pipeline_mode<synchronous>, transform_indices = @transform_3, window_bounds = array<i64: 64, 64>}, {pipeline_mode = #tpu.pipeline_mode<synchronous>, transform_indices = @transform_4, window_bounds = array<i64: 1, 64>}, {pipeline_mode = #tpu.pipeline_mode<synchronous>, transform_indices = @transform_5, window_bounds = array<i64: 64, 8>}, {pipeline_mode = #tpu.pipeline_mode<synchronous>, transform_indices = @transform_6, window_bounds = array<i64: 1, 8>}, {transform_indices = @transform_7, window_bounds = array<i64: 8, 8>}]} {
    %c0 = arith.constant 0 : index
    %c0_0 = arith.constant 0 : index
    %0 = vector.load %arg1[%c0, %c0_0] : memref<8x8xbf16, #tpu.memory_space<vmem>>, vector<8x8xbf16>
    %c0_1 = arith.constant 0 : index
    %c0_2 = arith.constant 0 : index
    %1 = vector.load %arg2[%c0_1, %c0_2] : memref<8x64xbf16, #tpu.memory_space<vmem>>, vector<8x64xbf16>
    %cst = arith.constant dense<0.000000e+00> : vector<8x64xf32>
    %2 = tpu.matmul %0, %1, %cst {dimension_numbers = #tpu.dot_dimension_numbers<[1], [0], [0], [1], [0, 0, 1, 1], [], []>} : vector<8x8xbf16>, vector<8x64xbf16>, vector<8x64xf32> -> vector<8x64xf32>
    %c0_3 = arith.constant 0 : index
    %c0_4 = arith.constant 0 : index
    %3 = vector.load %arg3[%c0_3, %c0_4] : memref<1x64xf32, #tpu.memory_space<vmem>>, vector<1x64xf32>
    %4 = vector.broadcast %3 : vector<1x64xf32> to vector<8x64xf32>
    %5 = arith.addf %2, %4 : vector<8x64xf32>
    %cst_5 = arith.constant 0.000000e+00 : f32
    %6 = vector.broadcast %cst_5 : f32 to vector<8x64xf32>
    %7 = arith.maximumf %5, %6 : vector<8x64xf32>
    %8 = arith.truncf %7 : vector<8x64xf32> to vector<8x64xbf16>
    %c0_6 = arith.constant 0 : index
    %c0_7 = arith.constant 0 : index
    %9 = vector.load %arg4[%c0_6, %c0_7] : memref<64x64xbf16, #tpu.memory_space<vmem>>, vector<64x64xbf16>
    %cst_8 = arith.constant dense<0.000000e+00> : vector<8x64xf32>
    %10 = tpu.matmul %8, %9, %cst_8 {dimension_numbers = #tpu.dot_dimension_numbers<[1], [0], [0], [1], [0, 0, 1, 1], [], []>} : vector<8x64xbf16>, vector<64x64xbf16>, vector<8x64xf32> -> vector<8x64xf32>
    %c0_9 = arith.constant 0 : index
    %c0_10 = arith.constant 0 : index
    %11 = vector.load %arg5[%c0_9, %c0_10] : memref<1x64xf32, #tpu.memory_space<vmem>>, vector<1x64xf32>
    %12 = vector.broadcast %11 : vector<1x64xf32> to vector<8x64xf32>
    %13 = arith.addf %10, %12 : vector<8x64xf32>
    %cst_11 = arith.constant 0.000000e+00 : f32
    %14 = vector.broadcast %cst_11 : f32 to vector<8x64xf32>
    %15 = arith.maximumf %13, %14 : vector<8x64xf32>
    %16 = arith.truncf %15 : vector<8x64xf32> to vector<8x64xbf16>
    %c0_12 = arith.constant 0 : index
    %c0_13 = arith.constant 0 : index
    %17 = vector.load %arg6[%c0_12, %c0_13] : memref<64x8xbf16, #tpu.memory_space<vmem>>, vector<64x8xbf16>
    %cst_14 = arith.constant dense<0.000000e+00> : vector<8x8xf32>
    %18 = tpu.matmul %16, %17, %cst_14 {dimension_numbers = #tpu.dot_dimension_numbers<[1], [0], [0], [1], [0, 0, 1, 1], [], []>} : vector<8x64xbf16>, vector<64x8xbf16>, vector<8x8xf32> -> vector<8x8xf32>
    %c0_15 = arith.constant 0 : index
    %c0_16 = arith.constant 0 : index
    %19 = vector.load %arg7[%c0_15, %c0_16] : memref<1x8xf32, #tpu.memory_space<vmem>>, vector<1x8xf32>
    %20 = vector.broadcast %19 : vector<1x8xf32> to vector<8x8xf32>
    %21 = arith.addf %18, %20 : vector<8x8xf32>
    %22 = arith.truncf %21 : vector<8x8xf32> to vector<8x8xbf16>
    %c0_17 = arith.constant 0 : index
    %c0_18 = arith.constant 0 : index
    %23 = vector.load %arg8[%c0_17, %c0_18] : memref<8x8xbf16, #tpu.memory_space<vmem>>, vector<8x8xbf16>
    tpu.vector_store %arg8[%c0_17, %c0_18], %22 {strides = array<i32>} : memref<8x8xbf16, #tpu.memory_space<vmem>>, vector<8x8xbf16>,
    return
  }
  func.func @transform_0(%arg0: i32) -> (i32, i32) {
    %c0_i32 = arith.constant 0 : i32
    %c0_i32_0 = arith.constant 0 : i32
    return %arg0, %c0_i32 : i32, i32
  }
  func.func @transform_1(%arg0: i32) -> (i32, i32) {
    %c0_i32 = arith.constant 0 : i32
    %c0_i32_0 = arith.constant 0 : i32
    %c0_i32_1 = arith.constant 0 : i32
    return %c0_i32, %c0_i32_0 : i32, i32
  }
  func.func @transform_2(%arg0: i32) -> (i32, i32) {
    %c0_i32 = arith.constant 0 : i32
    %c0_i32_0 = arith.constant 0 : i32
    %c0_i32_1 = arith.constant 0 : i32
    return %c0_i32, %c0_i32_0 : i32, i32
  }
  func.func @transform_3(%arg0: i32) -> (i32, i32) {
    %c0_i32 = arith.constant 0 : i32
    %c0_i32_0 = arith.constant 0 : i32
    %c0_i32_1 = arith.constant 0 : i32
    return %c0_i32, %c0_i32_0 : i32, i32
  }
  func.func @transform_4(%arg0: i32) -> (i32, i32) {
    %c0_i32 = arith.constant 0 : i32
    %c0_i32_0 = arith.constant 0 : i32
    %c0_i32_1 = arith.constant 0 : i32
    return %c0_i32, %c0_i32_0 : i32, i32
  }
  func.func @transform_5(%arg0: i32) -> (i32, i32) {
    %c0_i32 = arith.constant 0 : i32
    %c0_i32_0 = arith.constant 0 : i32
    %c0_i32_1 = arith.constant 0 : i32
    return %c0_i32, %c0_i32_0 : i32, i32
  }
  func.func @transform_6(%arg0: i32) -> (i32, i32) {
    %c0_i32 = arith.constant 0 : i32
    %c0_i32_0 = arith.constant 0 : i32
    %c0_i32_1 = arith.constant 0 : i32
    return %c0_i32, %c0_i32_0 : i32, i32
  }
  func.func @transform_7(%arg0: i32) -> (i32, i32) {
    %c0_i32 = arith.constant 0 : i32
    %c0_i32_0 = arith.constant 0 : i32
    return %arg0, %c0_i32 : i32, i32
  }
}

</mosaic_0001>

<llo_original>
// kernel: tpu_custom_call.1
$region0: #{tpu_custom_call.1}
  #allocation0 [shape = 'u32[]', space=smem, size = 0x4, offset = 0x4, fixed_abs, tag = 'smem constant byte address 0x4 - core index']
  #allocation1 [shape = 'u32[144,128]{1,0:T(1,128)}', space=vmem, size = 0x12000, scoped, tag = 'internal scratch']
  %s0 = inlined_call_operand.vmem [shape: bf16[8,8], index: 0, kind: input, shape index: {}]
  %s1 = inlined_call_operand.vmem [shape: bf16[8,64], index: 1, kind: input, shape index: {}]
  %s2 = inlined_call_operand.vmem [shape: f32[1,64], index: 2, kind: input, shape index: {}]
  %s3 = inlined_call_operand.vmem [shape: bf16[64,64], index: 3, kind: input, shape index: {}]
  %s4 = inlined_call_operand.vmem [shape: f32[1,64], index: 4, kind: input, shape index: {}]
  %s5 = inlined_call_operand.vmem [shape: bf16[64,8], index: 5, kind: input, shape index: {}]
  %s6 = inlined_call_operand.vmem [shape: f32[1,8], index: 6, kind: input, shape index: {}]
  %s7 = inlined_call_operand.hbm [shape: bf16[8,8], index: 7, kind: output, shape index: {}]
  %s8 = sld [smem:[#allocation0]]
  $region38: #{tpu_custom_call.1} parent=0
    _
  %s10 = ssub.s32 1, %s8
  %s11 = scalar_select 0, %s10, %s8
  $region1: #{tpu_custom_call.1} parent=0
    #allocation2 [shape = 'u8[2048]{0}', space=vmem, size = 0x800, scoped, tag = 'output window, operand 0, single buffered']
    #allocation3 [shape = 's32[1]{0}', space=sflag, size = 0x4, scoped, tag = 'scoped memory for tpu_custom_call.1']
    %12 = vsyncpa [#allocation3], 0
    // Predicated region
    $region2: #{tpu_custom_call.1} parent=1 // pred_check
      _
    $region3: #{tpu_custom_call.1} parent=1 // pred_check_branch
      %14 = sbr.rel (0) target = $region5
    $region4: #{tpu_custom_call.1} parent=1 // pred_region
      _
    $region5: #{tpu_custom_call.1} parent=1 // pred_fallthru
      _
    // Predicated region
    $region6: #{tpu_custom_call.1} parent=1 // pred_check
      _
    $region7: #{tpu_custom_call.1} parent=1 // pred_check_branch
      %16 = sbr.rel (0) target = $region9
    $region8: #{tpu_custom_call.1} parent=1 // pred_region
      _
    $region9: #{tpu_custom_call.1} parent=1 // pred_fallthru
      _
    // Predicated region
    $region10: #{tpu_custom_call.1} parent=1 // pred_check
      _
    $region11: #{tpu_custom_call.1} parent=1 // pred_check_branch
      %18 = sbr.rel (0) target = $region13
    $region12: #{tpu_custom_call.1} parent=1 // pred_region
      _
    $region13: #{tpu_custom_call.1} parent=1 // pred_fallthru
      _
    // Predicated region
    $region14: #{tpu_custom_call.1} parent=1 // pred_check
      _
    $region15: #{tpu_custom_call.1} parent=1 // pred_check_branch
      %20 = sbr.rel (0) target = $region17
    $region16: #{tpu_custom_call.1} parent=1 // pred_region
      _
    $region17: #{tpu_custom_call.1} parent=1 // pred_fallthru
      _
    // Predicated region
    $region18: #{tpu_custom_call.1} parent=1 // pred_check
      _
    $region19: #{tpu_custom_call.1} parent=1 // pred_check_branch
      %22 = sbr.rel (0) target = $region21
    $region20: #{tpu_custom_call.1} parent=1 // pred_region
      _
    $region21: #{tpu_custom_call.1} parent=1 // pred_fallthru
      _
    // Predicated region
    $region22: #{tpu_custom_call.1} parent=1 // pred_check
      _
    $region23: #{tpu_custom_call.1} parent=1 // pred_check_branch
      %24 = sbr.rel (0) target = $region25
    $region24: #{tpu_custom_call.1} parent=1 // pred_region
      _
    $region25: #{tpu_custom_call.1} parent=1 // pred_fallthru
      _
    // Predicated region
    $region26: #{tpu_custom_call.1} parent=1 // pred_check
      _
    $region27: #{tpu_custom_call.1} parent=1 // pred_check_branch
      %26 = sbr.rel (0) target = $region29
    $region28: #{tpu_custom_call.1} parent=1 // pred_region
      _
    $region29: #{tpu_custom_call.1} parent=1 // pred_fallthru
      _
    %v28 = vld [vmem:[%s0] sm:$0xf]
    %v29 = vld [vmem:[%s1] sm:$0xf]
    %v30 = vld [vmem:[%s2] sm:$0x1]
    %v32 = vlaneseq
    %v33 = vshrl.u32 %v32, 7
    %v34 = vsub.s32 0, %v33
    %v35 = vrot.slane %v30, %v34
    %vm37 = vcmask 64512
    %v39 = vsel %vm37, %v28, 0
    %vm41 = vcmask 1043456
    %v43 = vsel %vm41, %v29, 0
    %45 = vmatprep.subr.bf16.mxu0 0
    %46 = vmatpush1.bf16.msra.mxu0 %v43
    %47 = vmatprep.subr.bf16.mxu0 0
    %48 = vmatpush1.bf16.msra.mxu0 0
    %49 = vmatprep.subr.bf16.mxu0 0
    %50 = vmatpush1.bf16.msra.mxu0 0
    %51 = vmatprep.subr.bf16.mxu0 0
    %52 = vmatpush1.bf16.msra.mxu0 0
    %53 = vmatprep.subr.bf16.mxu0 0
    %54 = vmatpush1.bf16.msra.mxu0 0
    %55 = vmatprep.subr.bf16.mxu0 0
    %56 = vmatpush1.bf16.msra.mxu0 0
    %57 = vmatprep.subr.bf16.mxu0 0
    %58 = vmatpush1.bf16.msra.mxu0 0
    %59 = vmatprep.subr.bf16.mxu0 0
    %60 = vmatpush1.bf16.msra.mxu0 0
    %61 = vmatprep.subr.bf16.mxu0 0
    %62 = vmatpush1.bf16.msra.mxu0 0
    %63 = vmatprep.subr.bf16.mxu0 0
    %64 = vmatpush1.bf16.msra.mxu0 0
    %65 = vmatprep.subr.bf16.mxu0 0
    %66 = vmatpush1.bf16.msra.mxu0 0
    %67 = vmatprep.subr.bf16.mxu0 0
    %68 = vmatpush1.bf16.msra.mxu0 0
    %69 = vmatprep.subr.bf16.mxu0 0
    %70 = vmatpush1.bf16.msra.mxu0 0
    %71 = vmatprep.subr.bf16.mxu0 0
    %72 = vmatpush1.bf16.msra.mxu0 0
    %73 = vmatprep.subr.bf16.mxu0 0
    %74 = vmatpush1.bf16.msra.mxu0 0
    %75 = vmatprep.subr.bf16.mxu0 0
    %76 = vmatpush1.bf16.msra.mxu0 0
    %77 = vmatprep.mubr.bf16.mxu0 0
    %78 = vmatmul.mubr.bf16.gmra.mrb[0].mxu0 %v39
    %v79 = vpop.f32.mrb[0].mxu0
    %v80 = vadd.f32 %v35, %v79
    %v81 = vpop.f32.mrb[0].mxu0
    %v82 = vpop.f32.mrb[0].mxu0
    %v83 = vpop.f32.mrb[0].mxu0
    %84 = vdwg.mxu0
    %v85 = vmax.f32 %v80, 0.0
    %v86 = vpack.c.bf16 %v85, %v85
    %v87 = vld [vmem:[%s3] sm:$0xf]
    %v88 = vld [vmem:[%s3 + $0x4] sm:$0xf]
    %v89 = vld [vmem:[%s3 + $0x8] sm:$0xf]
    %v90 = vld [vmem:[%s3 + $0xc] sm:$0xf]
    %v91 = vld [vmem:[%s3 + $0x10] sm:$0xf]
    %v92 = vld [vmem:[%s3 + $0x14] sm:$0xf]
    %v93 = vld [vmem:[%s3 + $0x18] sm:$0xf]
    %v94 = vld [vmem:[%s3 + $0x1c] sm:$0xf]
    %v95 = vld [vmem:[%s4] sm:$0x1]
    %v97 = vlaneseq
    %v98 = vshrl.u32 %v97, 7
    %v99 = vsub.s32 0, %v98
    %v100 = vrot.slane %v95, %v99
    %v110 = vunpack.c.l.b16 %v87
    %v111 = vunpack.c.l.b16 %v88
    %v112 = vunpack.c.l.b16 %v89
    %v113 = vunpack.c.l.b16 %v90
    %v114 = vunpack.c.l.b16 %v91
    %v115 = vunpack.c.l.b16 %v92
    %v116 = vunpack.c.l.b16 %v93
    %v117 = vunpack.c.l.b16 %v94
    %v118 = vpack.c.b16 %v111, %v110
    %v119 = vpack.c.b16 %v113, %v112
    %v120 = vpack.c.b16 %v115, %v114
    %v121 = vpack.c.b16 %v117, %v116
    %vm126 = vcmask 523264
    %v128 = vsel %vm126, %v86, 0
    %130 = vmatprep.subr.bf16.mxu0 0
    %131 = vmatpush1.bf16.msra.mxu0 %v118
    %132 = vmatprep.subr.bf16.mxu0 0
    %133 = vmatpush1.bf16.msra.mxu0 %v119
    %134 = vmatprep.subr.bf16.mxu0 0
    %135 = vmatpush1.bf16.msra.mxu0 %v120
    %136 = vmatprep.subr.bf16.mxu0 0
    %137 = vmatpush1.bf16.msra.mxu0 %v121
    %138 = vmatprep.subr.bf16.mxu0 0
    %139 = vmatpush1.bf16.msra.mxu0 0
    %140 = vmatprep.subr.bf16.mxu0 0
    %141 = vmatpush1.bf16.msra.mxu0 0
    %142 = vmatprep.subr.bf16.mxu0 0
    %143 = vmatpush1.bf16.msra.mxu0 0
    %144 = vmatprep.subr.bf16.mxu0 0
    %145 = vmatpush1.bf16.msra.mxu0 0
    %146 = vmatprep.subr.bf16.mxu0 0
    %147 = vmatpush1.bf16.msra.mxu0 0
    %148 = vmatprep.subr.bf16.mxu0 0
    %149 = vmatpush1.bf16.msra.mxu0 0
    %150 = vmatprep.subr.bf16.mxu0 0
    %151 = vmatpush1.bf16.msra.mxu0 0
    %152 = vmatprep.subr.bf16.mxu0 0
    %153 = vmatpush1.bf16.msra.mxu0 0
    %154 = vmatprep.subr.bf16.mxu0 0
    %155 = vmatpush1.bf16.msra.mxu0 0
    %156 = vmatprep.subr.bf16.mxu0 0
    %157 = vmatpush1.bf16.msra.mxu0 0
    %158 = vmatprep.subr.bf16.mxu0 0
    %159 = vmatpush1.bf16.msra.mxu0 0
    %160 = vmatprep.subr.bf16.mxu0 0
    %161 = vmatpush1.bf16.msra.mxu0 0
    %162 = vmatprep.mubr.bf16.mxu0 0
    %163 = vmatmul.mubr.bf16.gmra.mrb[0].mxu0 %v128
    %v164 = vpop.f32.mrb[0].mxu0
    %v165 = vadd.f32 %v100, %v164
    %v166 = vpop.f32.mrb[0].mxu0
    %v167 = vpop.f32.mrb[0].mxu0
    %v168 = vpop.f32.mrb[0].mxu0
    %169 = vdwg.mxu0
    %v170 = vmax.f32 %v165, 0.0
    %v171 = vpack.c.bf16 %v170, %v170
    %v172 = vld [vmem:[%s5] sm:$0xf]
    %v173 = vld [vmem:[%s5 + $0x4] sm:$0xf]
    %v174 = vld [vmem:[%s5 + $0x8] sm:$0xf]
    %v175 = vld [vmem:[%s5 + $0xc] sm:$0xf]
    %v176 = vld [vmem:[%s5 + $0x10] sm:$0xf]
    %v177 = vld [vmem:[%s5 + $0x14] sm:$0xf]
    %v178 = vld [vmem:[%s5 + $0x18] sm:$0xf]
    %v179 = vld [vmem:[%s5 + $0x1c] sm:$0xf]
    %v180 = vld [vmem:[%s6] sm:$0x1]
    %v182 = vlaneseq
    %v183 = vshrl.u32 %v182, 7
    %v184 = vsub.s32 0, %v183
    %v185 = vrot.slane %v180, %v184
    %v195 = vunpack.c.l.b16 %v172
    %v196 = vunpack.c.l.b16 %v173
    %v197 = vunpack.c.l.b16 %v174
    %v198 = vunpack.c.l.b16 %v175
    %v199 = vunpack.c.l.b16 %v176
    %v200 = vunpack.c.l.b16 %v177
    %v201 = vunpack.c.l.b16 %v178
    %v202 = vunpack.c.l.b16 %v179
    %v203 = vpack.c.b16 %v196, %v195
    %v204 = vpack.c.b16 %v198, %v197
    %v205 = vpack.c.b16 %v200, %v199
    %v206 = vpack.c.b16 %v202, %v201
    %v212 = vsel %vm126, %v171, 0
    %214 = vmatprep.subr.bf16.mxu0 0
    %215 = vmatpush1.bf16.msra.mxu0 %v203
    %216 = vmatprep.subr.bf16.mxu0 0
    %217 = vmatpush1.bf16.msra.mxu0 %v204
    %218 = vmatprep.subr.bf16.mxu0 0
    %219 = vmatpush1.bf16.msra.mxu0 %v205
    %220 = vmatprep.subr.bf16.mxu0 0
    %221 = vmatpush1.bf16.msra.mxu0 %v206
    %222 = vmatprep.subr.bf16.mxu0 0
    %223 = vmatpush1.bf16.msra.mxu0 0
    %224 = vmatprep.subr.bf16.mxu0 0
    %225 = vmatpush1.bf16.msra.mxu0 0
    %226 = vmatprep.subr.bf16.mxu0 0
    %227 = vmatpush1.bf16.msra.mxu0 0
    %228 = vmatprep.subr.bf16.mxu0 0
    %229 = vmatpush1.bf16.msra.mxu0 0
    %230 = vmatprep.subr.bf16.mxu0 0
    %231 = vmatpush1.bf16.msra.mxu0 0
    %232 = vmatprep.subr.bf16.mxu0 0
    %233 = vmatpush1.bf16.msra.mxu0 0
    %234 = vmatprep.subr.bf16.mxu0 0
    %235 = vmatpush1.bf16.msra.mxu0 0
    %236 = vmatprep.subr.bf16.mxu0 0
    %237 = vmatpush1.bf16.msra.mxu0 0
    %238 = vmatprep.subr.bf16.mxu0 0
    %239 = vmatpush1.bf16.msra.mxu0 0
    %240 = vmatprep.subr.bf16.mxu0 0
    %241 = vmatpush1.bf16.msra.mxu0 0
    %242 = vmatprep.subr.bf16.mxu0 0
    %243 = vmatpush1.bf16.msra.mxu0 0
    %244 = vmatprep.subr.bf16.mxu0 0
    %245 = vmatpush1.bf16.msra.mxu0 0
    %246 = vmatprep.mubr.bf16.mxu0 0
    %247 = vmatmul.mubr.bf16.gmra.mrb[0].mxu0 %v212
    %v248 = vpop.f32.mrb[0].mxu0
    %v249 = vadd.f32 %v185, %v248
    %v250 = vpop.f32.mrb[0].mxu0
    %v251 = vpop.f32.mrb[0].mxu0
    %v252 = vpop.f32.mrb[0].mxu0
    %253 = vdwg.mxu0
    %v254 = vpack.c.bf16 %v249, %v249
    %vm255 = vcmask 60416
    %256 = vst.msk [vmem:[#allocation2] sm:$0xf] %vm255, %v254
    // Predicated region
    $region30: #{tpu_custom_call.1} parent=1 // pred_check
      _
    $region31: #{tpu_custom_call.1} parent=1 // pred_check_branch
      %258 = sbr.rel (0) target = $region33
    $region32: #{tpu_custom_call.1} parent=1 // pred_region
      %s260 = ssub.s32 64, 64
      %261 = vsyncadd [#allocation3], %s260
      %s263 = sshll.u32 [#allocation2], 4
      %s264 = int_to_ptr.vmem [resolvable:$true] %s263
      %266 = dma.vmem_to_hbm [thread:$0]  %s264, 64, %s7, [#allocation3]
    $region33: #{tpu_custom_call.1} parent=1 // pred_fallthru
      _
    // Predicated region
    $region34: #{tpu_custom_call.1} parent=1 // pred_check
      _
    $region35: #{tpu_custom_call.1} parent=1 // pred_check_branch
      %268 = sbr.rel (0) target = $region37
    $region36: #{tpu_custom_call.1} parent=1 // pred_region
      %269 = dma.done [#allocation3], 64
    $region37: #{tpu_custom_call.1} parent=1 // pred_fallthru
      _
    %270 = vsyncpa [#allocation3], 1

</llo_original>
